<compile_context>
chip_gen: v5e
topology: v5e:2x2
jax: 0.10.0
libtpu: 0.0.40
codegen_flags: <defaults>
</compile_context>

<pallas_src>
import functools

import jax
import jax.numpy as jnp
import numpy as np
from jax.experimental import pallas as pl
from jax.experimental.pallas import tpu as pltpu


def _pick_tile(hw, prefer=(256, 128, 512)):
    """Prefer 256 (v6e/v7x), then 128 (v5e), then 512; else one full-extent tile."""
    for t in prefer:
        if hw % t == 0:
            return t
    return hw  # small / odd spatial sizes: full-extent block (always legal)


def _vmem_limit(byte_terms, margin=8 << 20, cap=64 << 20, floor=16 << 20):
    """Shape-derived scoped-VMEM budget, capped at v7x's 64 MiB physical VMEM."""
    est = int(sum(byte_terms)) + margin
    return max(min(est, cap), floor)


# --------------------------------------------------------------------------------------
# Stage 1: fused key/value projection (1x1 convs + folded BN + ReLU), once per position.
# --------------------------------------------------------------------------------------
def _kv_proj_kernel(x_ref, wkv_ref, bkv_ref, kq_ref, v_ref, *, ck):
    # (Ck+Cv, Cin) @ (Cin, T) -> (Ck+Cv, T), bf16 operands, f32 accumulation.
    kqv = jnp.dot(wkv_ref[...], x_ref[0],
                  preferred_element_type=jnp.float32) + bkv_ref[...]
    # Key/query half: ReLU.  BN and the softmax scale Ck**-0.25 are folded into
    # wkv/bkv offline (ReLU commutes with positive scaling), value half is raw.
    kq_ref[0] = jnp.maximum(kqv[:ck, :], 0.0).astype(kq_ref.dtype)
    v_ref[0] = kqv[ck:, :].astype(v_ref.dtype)


# --------------------------------------------------------------------------------------
# Stage 2: flash-style attention over the precomputed bf16 kq / v, fused W conv.
# --------------------------------------------------------------------------------------
def _flash_kernel(kqq_ref, kqk_ref, v_ref, ww_ref, bw_ref, out_ref,
                  qT_scr, m_scr, l_scr, acc_scr):
    k_step = pl.program_id(2)

    # ---- init: stash the (TQ, Ck) query tile once per (q, b); reset softmax state.
    @pl.when(k_step == 0)
    def _init():
        # one f32 transpose per q sweep (robust lowering), stored bf16
        qT_scr[...] = kqq_ref[0].astype(jnp.float32).T.astype(qT_scr.dtype)
        m_scr[...] = jnp.full_like(m_scr, -jnp.inf)
        l_scr[...] = jnp.zeros_like(l_scr)
        acc_scr[...] = jnp.zeros_like(acc_scr)

    # ---- scores + online softmax update (bf16 MXU operands, f32 softmax math).
    s = jnp.dot(qT_scr[...], kqk_ref[0], preferred_element_type=jnp.float32)  # (TQ, TK)
    m_prev = m_scr[...]
    m_new = jnp.maximum(m_prev, jnp.max(s, axis=-1, keepdims=True))           # (TQ, 1)
    alpha = jnp.exp(m_prev - m_new)
    # NOTE: on v6e/v7x a bf16 exp here halves EUP pressure if profiling shows it
    # binding; kept f32 so the same kernel stays optimal on v5e (no bf16 EUP).
    p = jnp.exp(s - m_new)
    l_scr[...] = alpha * l_scr[...] + jnp.sum(p, axis=-1, keepdims=True)
    # acc += p @ v^T  (contract the TK dims of both: MXU-native trans_b)
    acc_scr[...] = alpha * acc_scr[...] + jax.lax.dot_general(
        p.astype(jnp.bfloat16), v_ref[0],
        dimension_numbers=(((1,), (1,)), ((), ())),
        preferred_element_type=jnp.float32)                                   # (TQ, Cv)
    m_scr[...] = m_new

    # ---- finalize: normalize, apply the W 1x1 conv, lane-dense (Cout, TQ) store.
    @pl.when(k_step == pl.num_programs(2) - 1)
    def _finalize():
        # exact reciprocal: once per q tile, off the hot loop -> free accuracy
        ctx = acc_scr[...] * pl.reciprocal(l_scr[...], approx=False)          # (TQ, Cv)
        o = jax.lax.dot_general(
            ww_ref[...], ctx,
            dimension_numbers=(((1,), (1,)), ((), ())),
            preferred_element_type=jnp.float32) + bw_ref[...]                 # (Cout, TQ)
        out_ref[0] = o.astype(out_ref.dtype)


def self_attention_block_2d(x_nchw, params, *, tq=None, tk=None):
    """x_nchw: (B, Cin, H, W) float32 -> (B, Cout, H, W) float32 (scale=1 path)."""
    B, Cin, H, W = x_nchw.shape
    HW = H * W
    Ck = params["wk"].shape[1]
    Cv = params["wv"].shape[1]
    Cout = params["ww"].shape[1]
    nkv = Ck + Cv

    # ----- offline algebraic folds (exact, eval-mode) -----
    # BN folded into the shared key/query conv; softmax scale Ck**-0.5 folded as
    # Ck**-0.25 onto that same (query == key) tensor via its weights/bias.
    qk_scale = float(Ck) ** -0.25
    wk_eff = params["wk"] * params["sk"] * qk_scale
    bk_eff = (params["bk"] * params["sk"] + params["tk"]) * qk_scale
    wkvT = jnp.concatenate([wk_eff, params["wv"]], axis=1).T.astype(jnp.bfloat16)  # (Ck+Cv, Cin)
    bkv = jnp.concatenate([bk_eff, params["bv"]], axis=1).T.astype(jnp.float32)    # (Ck+Cv, 1)
    wwT = params["ww"].T.astype(jnp.float32)                                       # (Cout, Cv)
    bwT = params["bw"].T.astype(jnp.float32)                                       # (Cout, 1)

    tq = tq or _pick_tile(HW)
    tk = tk or _pick_tile(HW)
    t1 = _pick_tile(HW, prefer=(512, 256, 128))  # stage-1 intermediates are tiny
    if HW % tq or HW % tk or HW % t1:
        raise ValueError(f"H*W={HW} must be divisible by tile sizes tq={tq}, tk={tk}, t1={t1}")

    # channel-major flattened spatial layout (a reshape view, no transpose); bf16 stream
    x = x_nchw.reshape(B, Cin, HW).astype(jnp.bfloat16)

    # ---------------- Stage 1: project kq / v once per image ----------------
    vmem1 = _vmem_limit([
        2 * Cin * t1 * 2,       # x tile, double-buffered, bf16
        2 * nkv * Cin * 2,      # resident fused kv weights (pipeline allocates 2x)
        2 * nkv * 4,            # fused bias
        2 * Ck * t1 * 2,        # kq output tile
        2 * Cv * t1 * 2,        # v output tile
        2 * nkv * t1 * 4,       # f32 projection intermediate headroom
    ])
    kq_hbm, v_hbm = pl.pallas_call(
        functools.partial(_kv_proj_kernel, ck=Ck),
        out_shape=(jax.ShapeDtypeStruct((B, Ck, HW), jnp.bfloat16),
                   jax.ShapeDtypeStruct((B, Cv, HW), jnp.bfloat16)),
        grid_spec=pltpu.PrefetchScalarGridSpec(
            num_scalar_prefetch=0,
            grid=(HW // t1, B),   # spatial axis first: splits across v7x cores even at B=1
            in_specs=[
                pl.BlockSpec((1, Cin, t1), lambda t, b: (b, 0, t)),
                pl.BlockSpec((nkv, Cin), lambda t, b: (0, 0)),   # resident weights
                pl.BlockSpec((nkv, 1), lambda t, b: (0, 0)),     # resident bias
            ],
            out_specs=[
                pl.BlockSpec((1, Ck, t1), lambda t, b: (b, 0, t)),
                pl.BlockSpec((1, Cv, t1), lambda t, b: (b, 0, t)),
            ],
        ),
        compiler_params=pltpu.CompilerParams(
            dimension_semantics=("parallel", "parallel"),
            vmem_limit_bytes=vmem1,
        ),
    )(x, wkvT, bkv)

    # ---------------- Stage 2: flash attention + fused W conv ----------------
    vmem2 = _vmem_limit([
        2 * Ck * tq * 2,        # q-side kq tile (resident over the k sweep)
        2 * Ck * tk * 2,        # streamed k-side kq tile (double-buffered bf16)
        2 * Cv * tk * 2,        # streamed v tile
        2 * Cout * Cv * 4,      # W weights
        2 * Cout * 4,           # W bias
        2 * Cout * tq * 4,      # output tile
        tq * Ck * 2 + 2 * tq * 4 + tq * Cv * 4,   # qT / m / l / acc scratch
        4 * tq * tk * 4,        # f32 score/softmax intermediates headroom
    ])
    out = pl.pallas_call(
        _flash_kernel,
        out_shape=jax.ShapeDtypeStruct((B, Cout, HW), jnp.float32),
        grid_spec=pltpu.PrefetchScalarGridSpec(
            num_scalar_prefetch=0,
            grid=(HW // tq, B, HW // tk),
            in_specs=[
                # q-side kq tile: constant across k -> fetched once per k sweep
                pl.BlockSpec((1, Ck, tq), lambda q, b, k: (b, 0, q)),
                # k-side kq / v tiles: streamed along k (sweep pl.Buffered(3) here on
                # slow-HBM parts such as v5e if the DMA ever shows up exposed)
                pl.BlockSpec((1, Ck, tk), lambda q, b, k: (b, 0, k)),
                pl.BlockSpec((1, Cv, tk), lambda q, b, k: (b, 0, k)),
                pl.BlockSpec((Cout, Cv), lambda q, b, k: (0, 0)),   # resident W weights
                pl.BlockSpec((Cout, 1), lambda q, b, k: (0, 0)),    # resident W bias
            ],
            out_specs=pl.BlockSpec((1, Cout, tq), lambda q, b, k: (b, 0, q)),
            scratch_shapes=[
                pltpu.VMEM((tq, Ck), jnp.bfloat16),   # pre-scaled query tile
                pltpu.VMEM((tq, 1), jnp.float32),     # running row max
                pltpu.VMEM((tq, 1), jnp.float32),     # running softmax denominator
                pltpu.VMEM((tq, Cv), jnp.float32),    # un-normalized context accumulator
            ],
        ),
        compiler_params=pltpu.CompilerParams(
            dimension_semantics=("parallel", "parallel", "arbitrary"),
            vmem_limit_bytes=vmem2,
        ),
    )(kq_hbm, kq_hbm, v_hbm, wwT, bwT)

    return out.reshape(B, Cout, H, W)


def self_attention_reference(x_nchw, params, key_channels):
    """Pure-JAX f32 reference with the same (eval-mode) semantics, un-folded."""
    B, Cin, H, W = x_nchw.shape
    HW = H * W
    x = jnp.transpose(x_nchw.reshape(B, Cin, HW), (0, 2, 1))        # (B, HW, Cin)

    kq = jnp.einsum("bnc,ck->bnk", x, params["wk"]) + params["bk"]
    kq = jnp.maximum(kq * params["sk"] + params["tk"], 0.0)         # BN + ReLU
    v = jnp.einsum("bnc,cv->bnv", x, params["wv"]) + params["bv"]
    sim = jnp.einsum("bnk,bmk->bnm", kq, kq) * (float(key_channels) ** -0.5)
    sim = jax.nn.softmax(sim, axis=-1)
    ctx = jnp.einsum("bnm,bmv->bnv", sim, v)
    out = jnp.einsum("bnv,vo->bno", ctx, params["ww"]) + params["bw"]
    Cout = out.shape[-1]
    return jnp.transpose(out, (0, 2, 1)).reshape(B, Cout, H, W)


def _fold_bn(key, c, eps=1e-5):
    k1, k2, k3, k4 = jax.random.split(key, 4)
    gamma = 1.0 + 0.1 * jax.random.normal(k1, (1, c), jnp.float32)
    beta = 0.1 * jax.random.normal(k2, (1, c), jnp.float32)
    mean = 0.1 * jax.random.normal(k3, (1, c), jnp.float32)
    var = jnp.abs(jax.random.normal(k4, (1, c), jnp.float32)) + 1.0
    scale = gamma / jnp.sqrt(var + eps)
    shift = beta - mean * scale
    return scale, shift


def make_params(key, in_channels, key_channels, value_channels, out_channels):
    ks = jax.random.split(key, 7)
    wk = 0.1 * jax.random.normal(ks[0], (in_channels, key_channels), jnp.float32)
    bk = 0.1 * jax.random.normal(ks[1], (1, key_channels), jnp.float32)
    sk, tk = _fold_bn(ks[2], key_channels)
    wv = 0.1 * jax.random.normal(ks[3], (in_channels, value_channels), jnp.float32)
    bv = 0.1 * jax.random.normal(ks[4], (1, value_channels), jnp.float32)
    # NOTE: the PyTorch module zero-inits W.weight / W.bias (output would be identically 0);
    # we use small nonzero values so the attention path stays live and testable.
    ww = 0.1 * jax.random.normal(ks[5], (value_channels, out_channels), jnp.float32)
    bw = 0.1 * jax.random.normal(ks[6], (1, out_channels), jnp.float32)
    return dict(wk=wk, bk=bk, sk=sk, tk=tk, wv=wv, bv=bv, ww=ww, bw=bw)


if __name__ == "__main__":
    B, Cin, H, W = 2, 32, 16, 16
    Ck, Cv = 16, 16
    Cout = Cin                      # module default: out_channels = in_channels

    key = jax.random.PRNGKey(0)
    kx, kp = jax.random.split(key)
    x = jax.random.normal(kx, (B, Cin, H, W), jnp.float32)
    params = make_params(kp, Cin, Ck, Cv, Cout)

    # tq=tk=128 so this small demo (HW=256) still exercises the multi-tile
    # online-softmax path (flash grid = (2, 2, 2)); the default picker uses
    # 256-first tiles for larger spatial sizes.
    out = jax.block_until_ready(self_attention_block_2d(x, params, tq=128, tk=128))
    ref = jax.block_until_ready(self_attention_reference(x, params, Ck))

    # bf16 projection + bf16 attention operands (f32 accumulation / softmax / exact
    # reciprocal) -> validate vs the f32 reference at ~3e-2.
    np.testing.assert_allclose(np.asarray(out), np.asarray(ref), atol=3e-2, rtol=3e-2)
    print("KERNEL_OK")
</pallas_src>

<mosaic_0001>
module attributes {stable_mosaic.version = 11 : i64} {
  func.func @_kv_proj_kernel(%arg0: i32, %arg1: i32, %arg2: memref<1x32x256xbf16, #tpu.memory_space<vmem>>, %arg3: memref<32x32xbf16, #tpu.memory_space<vmem>>, %arg4: memref<32x1xf32, #tpu.memory_space<vmem>>, %arg5: memref<1x16x256xbf16, #tpu.memory_space<vmem>>, %arg6: memref<1x16x256xbf16, #tpu.memory_space<vmem>>) attributes {dimension_semantics = [#tpu.dimension_semantics<parallel>, #tpu.dimension_semantics<parallel>], iteration_bounds = array<i64: 1, 2>, scalar_prefetch = 0 : i64, scratch_operands = 0 : i64, tpu.core_type = #tpu.core_type<tc>, window_params = [{transform_indices = @transform_0, window_bounds = array<i64: 1, 32, 256>}, {pipeline_mode = #tpu.pipeline_mode<synchronous>, transform_indices = @transform_1, window_bounds = array<i64: 32, 32>}, {pipeline_mode = #tpu.pipeline_mode<synchronous>, transform_indices = @transform_2, window_bounds = array<i64: 32, 1>}, {transform_indices = @transform_3, window_bounds = array<i64: 1, 16, 256>}, {transform_indices = @transform_4, window_bounds = array<i64: 1, 16, 256>}]} {
    %c0 = arith.constant 0 : index
    %c0_0 = arith.constant 0 : index
    %0 = vector.load %arg3[%c0, %c0_0] : memref<32x32xbf16, #tpu.memory_space<vmem>>, vector<32x32xbf16>
    %c0_1 = arith.constant 0 : index
    %c0_2 = arith.constant 0 : index
    %c0_3 = arith.constant 0 : index
    %1 = vector.load %arg2[%c0_1, %c0_2, %c0_3] : memref<1x32x256xbf16, #tpu.memory_space<vmem>>, vector<1x32x256xbf16>
    %2 = vector.shape_cast %1 : vector<1x32x256xbf16> to vector<32x256xbf16>
    %cst = arith.constant dense<0.000000e+00> : vector<32x256xf32>
    %3 = tpu.matmul %0, %2, %cst {dimension_numbers = #tpu.dot_dimension_numbers<[1], [0], [0], [1], [0, 0, 1, 1], [], []>} : vector<32x32xbf16>, vector<32x256xbf16>, vector<32x256xf32> -> vector<32x256xf32>
    %c0_4 = arith.constant 0 : index
    %c0_5 = arith.constant 0 : index
    %4 = vector.load %arg4[%c0_4, %c0_5] : memref<32x1xf32, #tpu.memory_space<vmem>>, vector<32x1xf32>
    %5 = vector.broadcast %4 : vector<32x1xf32> to vector<32x256xf32>
    %6 = arith.addf %3, %5 : vector<32x256xf32>
    %7 = vector.extract_strided_slice %6 {offsets = [0, 0], sizes = [16, 256], strides = [1, 1]} : vector<32x256xf32> to vector<16x256xf32>
    %cst_6 = arith.constant 0.000000e+00 : f32
    %8 = vector.broadcast %cst_6 : f32 to vector<16x256xf32>
    %9 = arith.maximumf %7, %8 : vector<16x256xf32>
    %10 = arith.truncf %9 : vector<16x256xf32> to vector<16x256xbf16>
    %c0_7 = arith.constant 0 : index
    %c0_8 = arith.constant 0 : index
    %c0_9 = arith.constant 0 : index
    %11 = vector.load %arg5[%c0_7, %c0_8, %c0_9] : memref<1x16x256xbf16, #tpu.memory_space<vmem>>, vector<1x16x256xbf16>
    %12 = vector.shape_cast %11 : vector<1x16x256xbf16> to vector<16x256xbf16>
    %13 = vector.shape_cast %10 : vector<16x256xbf16> to vector<1x16x256xbf16>
    tpu.vector_store %arg5[%c0_7, %c0_8, %c0_9], %13 {strides = array<i32>} : memref<1x16x256xbf16, #tpu.memory_space<vmem>>, vector<1x16x256xbf16>,
    %14 = vector.extract_strided_slice %6 {offsets = [16, 0], sizes = [16, 256], strides = [1, 1]} : vector<32x256xf32> to vector<16x256xf32>
    %15 = arith.truncf %14 : vector<16x256xf32> to vector<16x256xbf16>
    %c0_10 = arith.constant 0 : index
    %c0_11 = arith.constant 0 : index
    %c0_12 = arith.constant 0 : index
    %16 = vector.load %arg6[%c0_10, %c0_11, %c0_12] : memref<1x16x256xbf16, #tpu.memory_space<vmem>>, vector<1x16x256xbf16>
    %17 = vector.shape_cast %16 : vector<1x16x256xbf16> to vector<16x256xbf16>
    %18 = vector.shape_cast %15 : vector<16x256xbf16> to vector<1x16x256xbf16>
    tpu.vector_store %arg6[%c0_10, %c0_11, %c0_12], %18 {strides = array<i32>} : memref<1x16x256xbf16, #tpu.memory_space<vmem>>, vector<1x16x256xbf16>,
    return
  }
  func.func @transform_0(%arg0: i32, %arg1: i32) -> (i32, i32, i32) {
    %c0_i32 = arith.constant 0 : i32
    %c0_i32_0 = arith.constant 0 : i32
    return %arg1, %c0_i32, %arg0 : i32, i32, i32
  }
  func.func @transform_1(%arg0: i32, %arg1: i32) -> (i32, i32) {
    %c0_i32 = arith.constant 0 : i32
    %c0_i32_0 = arith.constant 0 : i32
    %c0_i32_1 = arith.constant 0 : i32
    return %c0_i32, %c0_i32_0 : i32, i32
  }
  func.func @transform_2(%arg0: i32, %arg1: i32) -> (i32, i32) {
    %c0_i32 = arith.constant 0 : i32
    %c0_i32_0 = arith.constant 0 : i32
    %c0_i32_1 = arith.constant 0 : i32
    return %c0_i32, %c0_i32_0 : i32, i32
  }
  func.func @transform_3(%arg0: i32, %arg1: i32) -> (i32, i32, i32) {
    %c0_i32 = arith.constant 0 : i32
    %c0_i32_0 = arith.constant 0 : i32
    return %arg1, %c0_i32, %arg0 : i32, i32, i32
  }
  func.func @transform_4(%arg0: i32, %arg1: i32) -> (i32, i32, i32) {
    %c0_i32 = arith.constant 0 : i32
    %c0_i32_0 = arith.constant 0 : i32
    return %arg1, %c0_i32, %arg0 : i32, i32, i32
  }
}

</mosaic_0001>

<llo_original>
// kernel: tpu_custom_call.1
$region0: #{tpu_custom_call.1}
  #allocation0 [shape = 'u32[]', space=smem, size = 0x4, offset = 0x4, fixed_abs, tag = 'smem constant byte address 0x4 - core index']
  #allocation1 [shape = 'u32[72,128]{1,0:T(1,128)}', space=vmem, size = 0x9000, scoped, tag = 'internal scratch']
  %s0 = inlined_call_operand.hbm [shape: bf16[2,32,256], index: 0, kind: input, shape index: {}]
  %s1 = inlined_call_operand.vmem [shape: bf16[32,32], index: 1, kind: input, shape index: {}]
  %s2 = inlined_call_operand.vmem [shape: f32[32,1], index: 2, kind: input, shape index: {}]
  %s3 = inlined_call_operand.hbm [shape: bf16[2,16,256], index: 3, kind: output, shape index: {0}]
  %s4 = inlined_call_operand.hbm [shape: bf16[2,16,256], index: 4, kind: output, shape index: {1}]
  %5 = xla_tuple %s3, %s4
  %s6 = sld [smem:[#allocation0]]
  $region57: #{tpu_custom_call.1} parent=0
    _
  %s8 = ssub.s32 1, %s6
  %s9 = scalar_select 0, %s8, %s6
  $region1: #{tpu_custom_call.1} parent=0
    #allocation2 [shape = 'u8[32768]{0}', space=vmem, size = 0x8000, scoped, tag = 'input window, operand 0']
    #allocation3 [shape = 's32[2]{0}', space=sflag, size = 0x8, scoped, tag = 'scoped memory for tpu_custom_call.1']
    #allocation4 [shape = 's32[2]{0}', space=sflag, size = 0x8, scoped, tag = 'scoped memory for tpu_custom_call.1']
    #allocation5 [shape = 'u8[16384]{0}', space=vmem, size = 0x4000, scoped, tag = 'output window, operand 0']
    #allocation6 [shape = 'u8[16384]{0}', space=vmem, size = 0x4000, scoped, tag = 'output window, operand 1']
    #allocation7 [shape = 's32[2]{0}', space=sflag, size = 0x8, scoped, tag = 'scoped memory for tpu_custom_call.1']
    %10 = vsyncpa [#allocation3], 0
    %s11 = scalar_lea.sflag [#allocation3], 1
    %12 = vsyncpa %s11, 0
    %13 = vsyncpa [#allocation4], 0
    %s14 = scalar_lea.sflag [#allocation4], 1
    %15 = vsyncpa %s14, 0
    %16 = vsyncpa [#allocation7], 0
    %s17 = scalar_lea.sflag [#allocation7], 1
    %18 = vsyncpa %s17, 0
    loop: start=0, step=1, limit=4
    $region2: #{tpu_custom_call.1} parent=1 // loop_pre_header
      _
    $region3: #{tpu_custom_call.1} parent=1 // loop_header
      %s20 = sphi 0, %s24
      %p21 = scmp.ge.s32.totalorder %s20, 4
      %s27 = sphi 0, %s39
      %s28 = sphi 0, %s35
      %s29 = sphi 0, %s27
      %s30 = sphi 0, %s28
      %s31 = sphi 0, %s29
      %s32 = sphi 0, %s30
      %s44 = sphi 0, %s46
      %s47 = sphi 0, %s44
      %s48 = sphi 0, %s47
      %s64 = sphi 0, %s48
      %s68 = sphi 0, %s68
      %s70 = sphi 0, %s68
      %s71 = sphi 0, %s70
      %s85 = sphi 0, %s71
      %s89 = sphi 0, %s89
      %s91 = sphi 0, %s89
      %s92 = sphi 0, %s91
      %s106 = sphi 0, %s92
      %s114 = sphi 0, %s116
      %s117 = sphi 0, %s114
      %s118 = sphi 0, %s117
      %s134 = sphi 0, %s118
      %s142 = sphi 0, %s144
      %s145 = sphi 0, %s142
      %s146 = sphi 0, %s145
      %s162 = sphi 0, %s146
    $region4: #{tpu_custom_call.1} parent=1 // loop_header_branch
      %23 = sbr.rel (%p21) target = $region8
    $region5: #{tpu_custom_call.1} parent=1 // loop_body
      %s25 = ssub.s32 %s20, 1
      %s26 = ssub.s32 %s20, 2
      %s33 = sadd.s32 1, %s28
      %p34 = scmp.ge.s32.totalorder %s33, 2
      %s35 = scalar_select %p34, 0, %s33
      %s36 = sadd.s32 1, %s27
      %s37 = scalar_select %p34, %s36, %s27
      %p38 = scmp.ge.s32.totalorder %s37, 1
      %s39 = scalar_select %p38, 0, %s37
      %s40 = ssub.s32 %s28, %s35
      %s41 = ssub.s32 %s27, %s39
      %s42 = sor.u32 %s40, %s41
      %p43 = scmp.eq.s32.totalorder %s42, 0
      %s45 = sadd.s32 %s44, 1
      %s46 = scalar_select %p43, %s44, %s45
      %p49 = pneg %p43
      %p50 = scmp.eq.s32.totalorder %s20, 1
      %p51 = por %p49, %p50
      %p52 = scmp.ne.s32.totalorder %s44, %s47
      %p53 = scmp.eq.s32.totalorder %s20, 0
      %p54 = por %p52, %p53
      %p55 = scmp.ne.s32.totalorder %s44, %s47
      %p56 = scmp.eq.s32.totalorder %s25, 1
      %p57 = por %p55, %p56
      %p58 = scmp.ne.s32.totalorder %s47, %s48
      %p59 = scmp.eq.s32.totalorder %s25, 0
      %p60 = por %p58, %p59
      %p61 = scmp.ne.s32.totalorder %s47, %s48
      %p62 = scmp.eq.s32.totalorder %s26, 1
      %p63 = por %p61, %p62
      %p65 = scmp.ne.s32.totalorder %s48, %s64
      %p66 = scmp.eq.s32.totalorder %s26, 0
      %p67 = por %p65, %p66
      %s69 = sadd.s32 %s68, 1
      %p72 = scmp.eq.s32.totalorder %s20, 1
      %p73 = scmp.ne.s32.totalorder %s68, %s70
      %p74 = scmp.eq.s32.totalorder %s20, 0
      %p75 = por %p73, %p74
      %p76 = scmp.ne.s32.totalorder %s68, %s70
      %p77 = scmp.eq.s32.totalorder %s25, 1
      %p78 = por %p76, %p77
      %p79 = scmp.ne.s32.totalorder %s70, %s71
      %p80 = scmp.eq.s32.totalorder %s25, 0
      %p81 = por %p79, %p80
      %p82 = scmp.ne.s32.totalorder %s70, %s71
      %p83 = scmp.eq.s32.totalorder %s26, 1
      %p84 = por %p82, %p83
      %p86 = scmp.ne.s32.totalorder %s71, %s85
      %p87 = scmp.eq.s32.totalorder %s26, 0
      %p88 = por %p86, %p87
      %s90 = sadd.s32 %s89, 1
      %p93 = scmp.eq.s32.totalorder %s20, 1
      %p94 = scmp.ne.s32.totalorder %s89, %s91
      %p95 = scmp.eq.s32.totalorder %s20, 0
      %p96 = por %p94, %p95
      %p97 = scmp.ne.s32.totalorder %s89, %s91
      %p98 = scmp.eq.s32.totalorder %s25, 1
      %p99 = por %p97, %p98
      %p100 = scmp.ne.s32.totalorder %s91, %s92
      %p101 = scmp.eq.s32.totalorder %s25, 0
      %p102 = por %p100, %p101
      %p103 = scmp.ne.s32.totalorder %s91, %s92
      %p104 = scmp.eq.s32.totalorder %s26, 1
      %p105 = por %p103, %p104
      %p107 = scmp.ne.s32.totalorder %s92, %s106
      %p108 = scmp.eq.s32.totalorder %s26, 0
      %p109 = por %p107, %p108
      %s110 = ssub.s32 %s28, %s35
      %s111 = ssub.s32 %s27, %s39
      %s112 = sor.u32 %s110, %s111
      %p113 = scmp.eq.s32.totalorder %s112, 0
      %s115 = sadd.s32 %s114, 1
      %s116 = scalar_select %p113, %s114, %s115
      %p119 = pneg %p113
      %p120 = scmp.eq.s32.totalorder %s20, 1
      %p121 = por %p119, %p120
      %p122 = scmp.ne.s32.totalorder %s114, %s117
      %p123 = scmp.eq.s32.totalorder %s20, 0
      %p124 = por %p122, %p123
      %p125 = scmp.ne.s32.totalorder %s114, %s117
      %p126 = scmp.eq.s32.totalorder %s25, 1
      %p127 = por %p125, %p126
      %p128 = scmp.ne.s32.totalorder %s117, %s118
      %p129 = scmp.eq.s32.totalorder %s25, 0
      %p130 = por %p128, %p129
      %p131 = scmp.ne.s32.totalorder %s117, %s118
      %p132 = scmp.eq.s32.totalorder %s26, 1
      %p133 = por %p131, %p132
      %p135 = scmp.ne.s32.totalorder %s118, %s134
      %p136 = scmp.eq.s32.totalorder %s26, 0
      %p137 = por %p135, %p136
      %s138 = ssub.s32 %s28, %s35
      %s139 = ssub.s32 %s27, %s39
      %s140 = sor.u32 %s138, %s139
      %p141 = scmp.eq.s32.totalorder %s140, 0
      %s143 = sadd.s32 %s142, 1
      %s144 = scalar_select %p141, %s142, %s143
      %p147 = pneg %p141
      %p148 = scmp.eq.s32.totalorder %s20, 1
      %p149 = por %p147, %p148
      %p150 = scmp.ne.s32.totalorder %s142, %s145
      %p151 = scmp.eq.s32.totalorder %s20, 0
      %p152 = por %p150, %p151
      %p153 = scmp.ne.s32.totalorder %s142, %s145
      %p154 = scmp.eq.s32.totalorder %s25, 1
      %p155 = por %p153, %p154
      %p156 = scmp.ne.s32.totalorder %s145, %s146
      %p157 = scmp.eq.s32.totalorder %s25, 0
      %p158 = por %p156, %p157
      %p159 = scmp.ne.s32.totalorder %s145, %s146
      %p160 = scmp.eq.s32.totalorder %s26, 1
      %p161 = por %p159, %p160
      %p163 = scmp.ne.s32.totalorder %s146, %s162
      %p164 = scmp.eq.s32.totalorder %s26, 0
      %p165 = por %p163, %p164
      %p166 = scmp.le.s32.totalorder 1, %s20
      %p167 = scmp.lt.s32.totalorder %s20, 3
      %p168 = pnand %p166, %p167
      %p169 = pneg %p168
      // Predicated region
      $region9: #{tpu_custom_call.1} parent=5 // pred_check
        _
      $region10: #{tpu_custom_call.1} parent=5 // pred_check_branch
        %171 = sbr.rel (%p168) target = $region12
      $region11: #{tpu_custom_call.1} parent=5 // pred_region
        %s172 = ssub.s32 %s20, 1
        // Predicated region
        $region13: #{tpu_custom_call.1} parent=11 // pred_check
          %p173 = pneg %p81
        $region14: #{tpu_custom_call.1} parent=11 // pred_check_branch
          %175 = sbr.rel (%p173) target = $region16
        $region15: #{tpu_custom_call.1} parent=11 // pred_region
          _
        $region16: #{tpu_custom_call.1} parent=11 // pred_fallthru
          _
        // Predicated region
        $region17: #{tpu_custom_call.1} parent=11 // pred_check
          %p176 = pneg %p102
        $region18: #{tpu_custom_call.1} parent=11 // pred_check_branch
          %178 = sbr.rel (%p176) target = $region20
        $region19: #{tpu_custom_call.1} parent=11 // pred_region
          _
        $region20: #{tpu_custom_call.1} parent=11 // pred_fallthru
          _
      $region12: #{tpu_custom_call.1} parent=5 // pred_fallthru
        _
      %p179 = scmp.lt.s32.totalorder %s20, 2
      // Predicated region
      $region21: #{tpu_custom_call.1} parent=5 // pred_check
        %p180 = pneg %p179
      $region22: #{tpu_custom_call.1} parent=5 // pred_check_branch
        %182 = sbr.rel (%p180) target = $region24
      $region23: #{tpu_custom_call.1} parent=5 // pred_region
        // Predicated region
        $region25: #{tpu_custom_call.1} parent=23 // pred_check
          %p183 = pneg %p54
        $region26: #{tpu_custom_call.1} parent=23 // pred_check_branch
          %185 = sbr.rel (%p183) target = $region28
        $region27: #{tpu_custom_call.1} parent=23 // pred_region
          %s186 = sand.u32 %s44, 1
          %s187 = scalar_lea.sflag [#allocation3], %s186
          %s188 = sand.u32 %s44, 1
          %s189 = smul.addr %s188, 32
          %s190 = scalar_lea.vmem [#allocation2], %s189
          %s191 = smul.u32 2, %s27
          %193 = vsyncadd %s187, 0
          %s194 = smul.addr %s28, 8
          %s195 = sadd.s32 %s191, %s194
          %s196 = smul.addr %s195, 4
          %s197 = scalar_lea.hbm %s0, %s196
          %s198 = sshll.u32 %s197, 4
          %s199 = int_to_ptr.hbm [resolvable:$true] %s198
          %s200 = sshll.u32 %s190, 4
          %s201 = int_to_ptr.vmem [resolvable:$true] %s200
          %206 = dma.hbm_to_vmem [thread:$0]  %s199, 512, %s201, %s187, 128, 128, 8
        $region28: #{tpu_custom_call.1} parent=23 // pred_fallthru
          _
      $region24: #{tpu_custom_call.1} parent=5 // pred_fallthru
        _
      %p207 = scmp.le.s32.totalorder 1, %s20
      %p208 = scmp.lt.s32.totalorder %s20, 3
      %p209 = pnand %p207, %p208
      %p210 = pneg %p209
      // Predicated region
      $region29: #{tpu_custom_call.1} parent=5 // pred_check
        _
      $region30: #{tpu_custom_call.1} parent=5 // pred_check_branch
        %212 = sbr.rel (%p209) target = $region32
      $region31: #{tpu_custom_call.1} parent=5 // pred_region
        %s213 = ssub.s32 %s20, 1
        %s214 = sand.u32 %s47, 1
        %s215 = scalar_lea.sflag [#allocation3], %s214
        %s216 = sand.u32 %s47, 1
        %s217 = smul.addr %s216, 32
        %s218 = scalar_lea.vmem [#allocation2], %s217
        // Predicated region
        $region33: #{tpu_custom_call.1} parent=31 // pred_check
          %p219 = pneg %p60
        $region34: #{tpu_custom_call.1} parent=31 // pred_check_branch
          %221 = sbr.rel (%p219) target = $region36
        $region35: #{tpu_custom_call.1} parent=31 // pred_region
          %223 = dma.done %s215, 512
        $region36: #{tpu_custom_call.1} parent=31 // pred_fallthru
          _
        %s224 = sand.u32 %s47, 1
        %s225 = scalar_lea.sflag [#allocation3], %s224
        %s226 = sand.u32 %s47, 1
        %s227 = smul.addr %s226, 32
        %s228 = scalar_lea.vmem [#allocation2], %s227
        %p229 = pneg %p60
        %p230 = pneg %p57
        %p231 = pneg %p81
        %p232 = pneg %p78
        %p233 = pneg %p102
        %p234 = pneg %p99
        %p235 = pneg %p130
        %p236 = pneg %p127
        %s237 = sand.u32 %s117, 1
        %s238 = scalar_lea.sflag [#allocation4], %s237
        %s239 = sand.u32 %s117, 1
        %s240 = smul.addr %s239, 16
        %s241 = scalar_lea.vmem [#allocation5], %s240
        %p242 = pneg %p158
        %p243 = pneg %p155
        %s244 = sand.u32 %s145, 1
        %s245 = scalar_lea.sflag [#allocation7], %s244
        %s246 = sand.u32 %s145, 1
        %s247 = smul.addr %s246, 16
        %s248 = scalar_lea.vmem [#allocation6], %s247
        %s249 = smul.u32 2, %s29
        %s250 = smul.u32 2, %s29
        %s251 = smul.u32 2, %s29
        %v253 = vld [vmem:[%s1] sm:$0xf]
        %v254 = vld [vmem:[%s1 + $0x4] sm:$0xf]
        %v255 = vld [vmem:[%s1 + $0x8] sm:$0xf]
        %v256 = vld [vmem:[%s1 + $0xc] sm:$0xf]
        %v257 = vld [vmem:[%s218] sm:$0xff]
        %v258 = vld [vmem:[%s218 + $0x8] sm:$0xff]
        %v259 = vld [vmem:[%s218 + $0x10] sm:$0xff]
        %v260 = vld [vmem:[%s218 + $0x18] sm:$0xff]
        %v261 = vld [vmem:[%s2] sm:$0xff]
        %v262 = vld [vmem:[%s2 + $0x8] sm:$0xff]
        %v263 = vld [vmem:[%s2 + $0x10] sm:$0xff]
        %v264 = vld [vmem:[%s2 + $0x18] sm:$0xff]
        %266 = vset.pattern.permute.xlu0 0
        %267 = vperm.xlu0 %266, %v261
        %v268 = vpop.permute.xlu0 %267
        %271 = vset.pattern.permute.xlu0 0
        %272 = vperm.xlu0 %271, %v262
        %v273 = vpop.permute.xlu0 %272
        %276 = vset.pattern.permute.xlu0 0
        %277 = vperm.xlu0 %276, %v263
        %v278 = vpop.permute.xlu0 %277
        %281 = vset.pattern.permute.xlu0 0
        %282 = vperm.xlu0 %281, %v264
        %v283 = vpop.permute.xlu0 %282
        %v289 = vunpack.c.l.b16 %v253
        %v290 = vunpack.c.l.b16 %v254
        %v291 = vunpack.c.l.b16 %v255
        %v292 = vunpack.c.l.b16 %v256
        %v293 = vpack.c.b16 %v290, %v289
        %v294 = vpack.c.b16 %v292, %v291
        %v299 = vunpack.c.l.b16 %v257
        %v300 = vunpack.c.h.b16 %v257
        %v301 = vunpack.c.l.b16 %v258
        %v302 = vunpack.c.h.b16 %v258
        %v303 = vunpack.c.l.b16 %v259
        %v304 = vunpack.c.h.b16 %v259
        %v305 = vunpack.c.l.b16 %v260
        %v306 = vunpack.c.h.b16 %v260
        %v307 = vpack.c.b16 %v301, %v299
        %v308 = vpack.c.b16 %v302, %v300
        %v309 = vpack.c.b16 %v305, %v303
        %v310 = vpack.c.b16 %v306, %v304
        %vm315 = vcmask 261120
        %v317 = vsel %vm315, %v293, 0
        %v320 = vsel %vm315, %v294, 0
        %322 = vmatpush.bf16.msra.mxu0 0
        %323 = vmatpush.bf16.msra.mxu0 0
        %324 = vmatpush.bf16.msra.mxu0 0
        %325 = vmatpush.bf16.msra.mxu0 0
        %326 = vmatpush.bf16.msra.mxu0 0
        %327 = vmatpush.bf16.msra.mxu0 0
        %328 = vmatpush.bf16.msra.mxu0 %v309
        %329 = vmatpush.bf16.msra.mxu0 %v307
        %330 = vmatmul.bf16.gmra.mxu0 %v317
        %v331 = vpop.f32.mrf.mxu0
        %v332 = vadd.f32 %v268, %v331
        %v333 = vpop.f32.mrf.mxu0
        %v334 = vadd.f32 %v273, %v333
        %335 = vmatmul.bf16.gmra.mxu0 %v320
        %v336 = vpop.f32.mrf.mxu0
        %v337 = vadd.f32 %v278, %v336
        %v338 = vpop.f32.mrf.mxu0
        %v339 = vadd.f32 %v283, %v338
        %340 = vdwg.mxu0
        %341 = vmatpush.bf16.msra.mxu0 0
        %342 = vmatpush.bf16.msra.mxu0 0
        %343 = vmatpush.bf16.msra.mxu0 0
        %344 = vmatpush.bf16.msra.mxu0 0
        %345 = vmatpush.bf16.msra.mxu0 0
        %346 = vmatpush.bf16.msra.mxu0 0
        %347 = vmatpush.bf16.msra.mxu0 %v310
        %348 = vmatpush.bf16.msra.mxu0 %v308
        %349 = vmatmul.bf16.gmra.mxu0 %v317
        %v350 = vpop.f32.mrf.mxu0
        %v351 = vadd.f32 %v268, %v350
        %v352 = vpop.f32.mrf.mxu0
        %v353 = vadd.f32 %v273, %v352
        %354 = vmatmul.bf16.gmra.mxu0 %v320
        %v355 = vpop.f32.mrf.mxu0
        %v356 = vadd.f32 %v278, %v355
        %v357 = vpop.f32.mrf.mxu0
        %v358 = vadd.f32 %v283, %v357
        %359 = vdwg.mxu0
        %v360 = vmax.f32 %v332, 0.0
        %v361 = vmax.f32 %v351, 0.0
        %v362 = vmax.f32 %v334, 0.0
        %v363 = vmax.f32 %v353, 0.0
        %v364 = vpack.c.bf16 %v361, %v360
        %v365 = vpack.c.bf16 %v363, %v362
        %366 = vst [vmem:[%s241] sm:$0xff] %v364
        %367 = vst [vmem:[%s241 + $0x8] sm:$0xff] %v365
        %v368 = vpack.c.bf16 %v356, %v337
        %v369 = vpack.c.bf16 %v358, %v339
        %370 = vst [vmem:[%s248] sm:$0xff] %v368
        %371 = vst [vmem:[%s248 + $0x8] sm:$0xff] %v369
        %s372 = sand.u32 %s117, 1
        %s373 = scalar_lea.sflag [#allocation4], %s372
        %s374 = sand.u32 %s117, 1
        %s375 = smul.addr %s374, 16
        %s376 = scalar_lea.vmem [#allocation5], %s375
        %s377 = sand.u32 %s145, 1
        %s378 = scalar_lea.sflag [#allocation7], %s377
        %s379 = sand.u32 %s145, 1
        %s380 = smul.addr %s379, 16
        %s381 = scalar_lea.vmem [#allocation6], %s380
        // Predicated region
        $region37: #{tpu_custom_call.1} parent=31 // pred_check
          %p382 = pneg %p127
        $region38: #{tpu_custom_call.1} parent=31 // pred_check_branch
          %384 = sbr.rel (%p382) target = $region40
        $region39: #{tpu_custom_call.1} parent=31 // pred_region
          %s385 = smul.u32 2, %s29
          %387 = vsyncadd %s373, 0
          %s388 = smul.addr %s30, 4
          %s389 = sadd.s32 %s385, %s388
          %s390 = smul.addr %s389, 4
          %s391 = scalar_lea.hbm %s3, %s390
          %s392 = sshll.u32 %s376, 4
          %s393 = int_to_ptr.vmem [resolvable:$true] %s392
          %s394 = sshll.u32 %s391, 4
          %s395 = int_to_ptr.hbm [resolvable:$true] %s394
          %400 = dma.vmem_to_hbm [thread:$0]  %s393, 256, %s395, %s373, 128, 128, 8
        $region40: #{tpu_custom_call.1} parent=31 // pred_fallthru
          _
        // Predicated region
        $region41: #{tpu_custom_call.1} parent=31 // pred_check
          %p401 = pneg %p155
        $region42: #{tpu_custom_call.1} parent=31 // pred_check_branch
          %403 = sbr.rel (%p401) target = $region44
        $region43: #{tpu_custom_call.1} parent=31 // pred_region
          %s404 = smul.u32 2, %s29
          %406 = vsyncadd %s378, 0
          %s407 = smul.addr %s30, 4
          %s408 = sadd.s32 %s404, %s407
          %s409 = smul.addr %s408, 4
          %s410 = scalar_lea.hbm %s4, %s409
          %s411 = sshll.u32 %s381, 4
          %s412 = int_to_ptr.vmem [resolvable:$true] %s411
          %s413 = sshll.u32 %s410, 4
          %s414 = int_to_ptr.hbm [resolvable:$true] %s413
          %419 = dma.vmem_to_hbm [thread:$0]  %s412, 256, %s414, %s378, 128, 128, 8
        $region44: #{tpu_custom_call.1} parent=31 // pred_fallthru
          _
      $region32: #{tpu_custom_call.1} parent=5 // pred_fallthru
        _
      %p420 = scmp.le.s32.totalorder 2, %s20
      // Predicated region
      $region45: #{tpu_custom_call.1} parent=5 // pred_check
        %p421 = pneg %p420
      $region46: #{tpu_custom_call.1} parent=5 // pred_check_branch
        %423 = sbr.rel (%p421) target = $region48
      $region47: #{tpu_custom_call.1} parent=5 // pred_region
        %s424 = ssub.s32 %s20, 2
        // Predicated region
        $region49: #{tpu_custom_call.1} parent=47 // pred_check
          %p425 = pneg %p133
        $region50: #{tpu_custom_call.1} parent=47 // pred_check_branch
          %427 = sbr.rel (%p425) target = $region52
        $region51: #{tpu_custom_call.1} parent=47 // pred_region
          %s428 = sand.u32 %s118, 1
          %s429 = scalar_lea.sflag [#allocation4], %s428
          %s430 = sand.u32 %s118, 1
          %s431 = smul.addr %s430, 16
          %s432 = scalar_lea.vmem [#allocation5], %s431
          %434 = dma.done %s429, 256
        $region52: #{tpu_custom_call.1} parent=47 // pred_fallthru
          _
        // Predicated region
        $region53: #{tpu_custom_call.1} parent=47 // pred_check
          %p435 = pneg %p161
        $region54: #{tpu_custom_call.1} parent=47 // pred_check_branch
          %437 = sbr.rel (%p435) target = $region56
        $region55: #{tpu_custom_call.1} parent=47 // pred_region
          %s438 = sand.u32 %s146, 1
          %s439 = scalar_lea.sflag [#allocation7], %s438
          %s440 = sand.u32 %s146, 1
          %s441 = smul.addr %s440, 16
          %s442 = scalar_lea.vmem [#allocation6], %s441
          %444 = dma.done %s439, 256
        $region56: #{tpu_custom_call.1} parent=47 // pred_fallthru
          _
      $region48: #{tpu_custom_call.1} parent=5 // pred_fallthru
        _
    $region6: #{tpu_custom_call.1} parent=1 // loop_footer
      %s24 = sadd.s32 1, %s20
    $region7: #{tpu_custom_call.1} parent=1 // loop_footer_branch
      %19 = sbr.rel target = $region3
    $region8: #{tpu_custom_call.1} parent=1 // loop_exit
      _
    %445 = vsyncpa [#allocation3], 1
    %s446 = scalar_lea.sflag [#allocation3], 1
    %447 = vsyncpa %s446, 1
    %448 = vsyncpa [#allocation4], 1
    %s449 = scalar_lea.sflag [#allocation4], 1
    %450 = vsyncpa %s449, 1
    %451 = vsyncpa [#allocation7], 1
    %s452 = scalar_lea.sflag [#allocation7], 1
    %453 = vsyncpa %s452, 1

</llo_original>
